<compile_context>
chip_gen: v6e
topology: v6e:2x2x1
jax: 0.10.0
libtpu: 0.0.40
codegen_flags: <defaults>
</compile_context>

<pallas_src>
import jax
import jax.numpy as jnp
from jax.experimental import pallas as pl
from jax.experimental.pallas import tpu as pltpu

_LANE = 128
_SUB = 8


# ----------------------------- Pallas kernel ------------------------------ #

def _sum_sq_diff_kernel(o_ref, g_ref, acc_ref):
    """Accumulate sum((o - g)^2), vector-shaped, into a resident (8,128) block.

    Grid = (n_par, n_steps): axis 0 is 'parallel' (megacore shard), axis 1 is
    the 'arbitrary' reduction axis.  The output block index depends only on the
    parallel axis, so acc_ref stays VMEM-resident across all reduction steps.
    """
    s = pl.program_id(1)

    @pl.when(s == 0)
    def _():
        acc_ref[...] = jnp.zeros_like(acc_ref)

    d = o_ref[...].astype(jnp.float32) - g_ref[...].astype(jnp.float32)
    sq = d * d
    # (tr, 128) -> (tr//8, 8, 128); summing over the leading axis is plain
    # vreg-wise VALU adds (no XLU), keeping the inner loop hidden under DMA.
    acc_ref[...] += jnp.sum(sq.reshape(-1, _SUB, _LANE), axis=0)


def _round_up(x, m):
    return ((x + m - 1) // m) * m


def pallas_sum_sq_diff(output, gt, *, max_tile_rows=1024):
    """sum((output - gt)^2) via a Pallas TPU reduction kernel (any dtype)."""
    assert output.shape == gt.shape, "output / gt shape mismatch"
    n_elem = output.size

    o = output.reshape(-1)
    g = gt.reshape(-1)

    rows = pl.cdiv(n_elem, _LANE)

    # Use both TensorCores (v7x) only when there is enough work to split.
    n_par = 2 if rows >= 2 * max_tile_rows else 1

    # Biggest tile that fits the VMEM budget (sized against v7x's 64 MiB
    # physical / 32 MiB scoped default: 2 inputs x 2 buffers x tr x 128 x 4 B).
    tr = min(max_tile_rows, _round_up(pl.cdiv(rows, n_par), _SUB))

    rows_padded = _round_up(rows, n_par * tr)
    n_steps = rows_padded // (n_par * tr)

    # Zero-pad the tail; padded zeros contribute 0 to the squared-error sum.
    pad = rows_padded * _LANE - n_elem
    if pad:
        o = jnp.pad(o, (0, pad))
        g = jnp.pad(g, (0, pad))

    o2 = o.reshape(rows_padded, _LANE)
    g2 = g.reshape(rows_padded, _LANE)

    partials = pl.pallas_call(
        _sum_sq_diff_kernel,
        out_shape=jax.ShapeDtypeStruct((n_par * _SUB, _LANE), jnp.float32),
        grid_spec=pltpu.PrefetchScalarGridSpec(
            num_scalar_prefetch=0,
            grid=(n_par, n_steps),
            in_specs=[
                pl.BlockSpec((tr, _LANE), lambda p, s: (p * n_steps + s, 0)),
                pl.BlockSpec((tr, _LANE), lambda p, s: (p * n_steps + s, 0)),
            ],
            out_specs=pl.BlockSpec((_SUB, _LANE), lambda p, s: (p, 0)),
        ),
        compiler_params=pltpu.CompilerParams(
            dimension_semantics=("parallel", "arbitrary"),
        ),
    )(o2, g2)

    # Single tiny cross-lane/sublane reduce over (n_par*8, 128) partials,
    # done once outside the kernel.
    return jnp.sum(partials)


def pallas_mse(output, gt):
    """Mean squared error with the Pallas reduction hot path."""
    return pallas_sum_sq_diff(output, gt) / jnp.float32(output.size)


# ---------------------------- Module equivalents --------------------------- #

class Metric:
    """JAX equivalent of the PyTorch base `Metric` module."""

    def __call__(self, output, gt):
        return self.forward(output, gt)

    def forward(self, output, gt):
        # torch.no_grad() equivalent: stop gradients through the metric.
        output = jax.lax.stop_gradient(output)
        gt = jax.lax.stop_gradient(gt)
        return self.compute_metric(output, gt)

    def compute_metric(self, output, gt):
        # TODO(synk): base-class compute_metric is abstract and returns None in
        # the reference PyTorch code; there is nothing to lower to Pallas here.
        return None


class MSEMetric(Metric):
    """Concrete metric whose squared-error reduction runs in Pallas."""

    def compute_metric(self, output, gt):
        return pallas_mse(output, gt)


# ---------------------------------- main ----------------------------------- #

if __name__ == "__main__":
    key = jax.random.PRNGKey(0)
    k_out, k_gt = jax.random.split(key)

    # Small shapes consistent with an image-metric use case (NCHW).
    output = jax.random.normal(k_out, (2, 4, 16, 16), dtype=jnp.float32)
    gt = jax.random.normal(k_gt, (2, 4, 16, 16), dtype=jnp.float32)

    # Base-class semantics: forward returns None (matches PyTorch exactly).
    base_metric = Metric()
    assert base_metric(output, gt) is None

    # Pallas-backed concrete metric.
    metric = MSEMetric()
    value = metric(output, gt)
    value = jax.block_until_ready(value)

    # Pure-JAX reference check.
    ref = jnp.mean((output - gt) ** 2)
    assert jnp.allclose(value, ref, rtol=1e-6, atol=1e-6), (value, ref)

    print("KERNEL_OK")
</pallas_src>

<mosaic_0001>
module attributes {stable_mosaic.version = 11 : i64} {
  func.func @_sum_sq_diff_kernel(%arg0: i32, %arg1: i32, %arg2: memref<16x128xf32, #tpu.memory_space<vmem>>, %arg3: memref<16x128xf32, #tpu.memory_space<vmem>>, %arg4: memref<8x128xf32, #tpu.memory_space<vmem>>) attributes {dimension_semantics = [#tpu.dimension_semantics<parallel>, #tpu.dimension_semantics<arbitrary>], iteration_bounds = array<i64: 1, 1>, scalar_prefetch = 0 : i64, scratch_operands = 0 : i64, tpu.core_type = #tpu.core_type<tc>, window_params = [{transform_indices = @transform_0, window_bounds = array<i64: 16, 128>}, {transform_indices = @transform_1, window_bounds = array<i64: 16, 128>}, {transform_indices = @transform_2, window_bounds = array<i64: 8, 128>}]} {
    %c0_i32 = arith.constant 0 : i32
    %0 = arith.cmpi eq, %arg1, %c0_i32 : i32
    %1 = arith.extui %0 : i1 to i32
    %c0_i32_0 = arith.constant 0 : i32
    %2 = arith.cmpi ne, %1, %c0_i32_0 : i32
    scf.if %2 {
      %cst_8 = arith.constant 0.000000e+00 : f32
      %12 = vector.broadcast %cst_8 : f32 to vector<8x128xf32>
      %c0_9 = arith.constant 0 : index
      %c0_10 = arith.constant 0 : index
      %13 = vector.load %arg4[%c0_9, %c0_10] : memref<8x128xf32, #tpu.memory_space<vmem>>, vector<8x128xf32>
      tpu.vector_store %arg4[%c0_9, %c0_10], %12 {strides = array<i32>} : memref<8x128xf32, #tpu.memory_space<vmem>>, vector<8x128xf32>,
    } else {
    }
    %c0 = arith.constant 0 : index
    %c0_1 = arith.constant 0 : index
    %3 = vector.load %arg2[%c0, %c0_1] : memref<16x128xf32, #tpu.memory_space<vmem>>, vector<16x128xf32>
    %c0_2 = arith.constant 0 : index
    %c0_3 = arith.constant 0 : index
    %4 = vector.load %arg3[%c0_2, %c0_3] : memref<16x128xf32, #tpu.memory_space<vmem>>, vector<16x128xf32>
    %5 = arith.subf %3, %4 : vector<16x128xf32>
    %6 = arith.mulf %5, %5 : vector<16x128xf32>
    %c0_4 = arith.constant 0 : index
    %c0_5 = arith.constant 0 : index
    %7 = vector.load %arg4[%c0_4, %c0_5] : memref<8x128xf32, #tpu.memory_space<vmem>>, vector<8x128xf32>
    %8 = vector.shape_cast %6 : vector<16x128xf32> to vector<2x8x128xf32>
    %cst = arith.constant dense<0.000000e+00> : vector<8x128xf32>
    %9 = vector.multi_reduction <add>, %8, %cst [0] : vector<2x8x128xf32> to vector<8x128xf32>
    %10 = arith.addf %7, %9 : vector<8x128xf32>
    %c0_6 = arith.constant 0 : index
    %c0_7 = arith.constant 0 : index
    %11 = vector.load %arg4[%c0_6, %c0_7] : memref<8x128xf32, #tpu.memory_space<vmem>>, vector<8x128xf32>
    tpu.vector_store %arg4[%c0_6, %c0_7], %10 {strides = array<i32>} : memref<8x128xf32, #tpu.memory_space<vmem>>, vector<8x128xf32>,
    return
  }
  func.func @transform_0(%arg0: i32, %arg1: i32) -> (i32, i32) {
    %c1_i32 = arith.constant 1 : i32
    %0 = arith.muli %arg0, %c1_i32 : i32
    %1 = arith.addi %0, %arg1 : i32
    %c0_i32 = arith.constant 0 : i32
    %c0_i32_0 = arith.constant 0 : i32
    return %1, %c0_i32 : i32, i32
  }
  func.func @transform_1(%arg0: i32, %arg1: i32) -> (i32, i32) {
    %c1_i32 = arith.constant 1 : i32
    %0 = arith.muli %arg0, %c1_i32 : i32
    %1 = arith.addi %0, %arg1 : i32
    %c0_i32 = arith.constant 0 : i32
    %c0_i32_0 = arith.constant 0 : i32
    return %1, %c0_i32 : i32, i32
  }
  func.func @transform_2(%arg0: i32, %arg1: i32) -> (i32, i32) {
    %c0_i32 = arith.constant 0 : i32
    %c0_i32_0 = arith.constant 0 : i32
    return %arg0, %c0_i32 : i32, i32
  }
}

</mosaic_0001>

<llo_original>
// kernel: tpu_custom_call.1
$region0: #{tpu_custom_call.1}
  #allocation0 [shape = 'u32[]', space=smem, size = 0x4, offset = 0x4, fixed_abs, tag = 'smem constant byte address 0x4 - core index']
  #allocation1 [shape = 'u32[144,128]{1,0:T(1,128)}', space=vmem, size = 0x12000, scoped, tag = 'internal scratch']
  %s0 = inlined_call_operand.hbm [shape: f32[16,128], index: 0, kind: input, shape index: {}]
  %s1 = inlined_call_operand.hbm [shape: f32[16,128], index: 1, kind: input, shape index: {}]
  %s2 = inlined_call_operand.hbm [shape: f32[8,128], index: 2, kind: output, shape index: {}]
  %s3 = sld [smem:[#allocation0]]
  $region30: #{tpu_custom_call.1} parent=0
    _
  %s5 = ssub.s32 1, %s3
  %s6 = scalar_select 0, %s5, %s3
  $region1: #{tpu_custom_call.1} parent=0
    #allocation2 [shape = 'u8[8192]{0}', space=vmem, size = 0x2000, scoped, tag = 'input window, operand 0, single buffered']
    #allocation3 [shape = 's32[1]{0}', space=sflag, size = 0x4, scoped, tag = 'scoped memory for tpu_custom_call.1']
    #allocation4 [shape = 's32[1]{0}', space=sflag, size = 0x4, scoped, tag = 'scoped memory for tpu_custom_call.1']
    #allocation5 [shape = 'u8[8192]{0}', space=vmem, size = 0x2000, scoped, tag = 'input window, operand 1, single buffered']
    #allocation6 [shape = 's32[1]{0}', space=sflag, size = 0x4, scoped, tag = 'scoped memory for tpu_custom_call.1']
    #allocation7 [shape = 'u8[4096]{0}', space=vmem, size = 0x1000, scoped, tag = 'output window, operand 0, single buffered']
    %7 = vsyncpa [#allocation3], 0
    %8 = vsyncpa [#allocation6], 0
    %9 = vsyncpa [#allocation4], 0
    // Predicated region
    $region2: #{tpu_custom_call.1} parent=1 // pred_check
      _
    $region3: #{tpu_custom_call.1} parent=1 // pred_check_branch
      %11 = sbr.rel (0) target = $region5
    $region4: #{tpu_custom_call.1} parent=1 // pred_region
      %s12 = sadd.s32 0, 0
      %s13 = smul.u32 2, %s12
      %s15 = ssub.s32 256, 256
      %16 = vsyncadd [#allocation3], %s15
      %s17 = smul.addr %s13, 128
      %s18 = scalar_lea.hbm %s0, %s17
      %s19 = sshll.u32 [#allocation2], 4
      %s20 = int_to_ptr.vmem [resolvable:$true] %s19
      %25 = dma.hbm_to_vmem [thread:$0]  %s18, 256, %s20, [#allocation3], 128, 128, 8
    $region5: #{tpu_custom_call.1} parent=1 // pred_fallthru
      _
    // Predicated region
    $region6: #{tpu_custom_call.1} parent=1 // pred_check
      _
    $region7: #{tpu_custom_call.1} parent=1 // pred_check_branch
      %27 = sbr.rel (0) target = $region9
    $region8: #{tpu_custom_call.1} parent=1 // pred_region
      %s28 = sadd.s32 0, 0
      %s29 = smul.u32 2, %s28
      %s31 = ssub.s32 256, 256
      %32 = vsyncadd [#allocation6], %s31
      %s33 = smul.addr %s29, 128
      %s34 = scalar_lea.hbm %s1, %s33
      %s35 = sshll.u32 [#allocation5], 4
      %s36 = int_to_ptr.vmem [resolvable:$true] %s35
      %41 = dma.hbm_to_vmem [thread:$0]  %s34, 256, %s36, [#allocation6], 128, 128, 8
    $region9: #{tpu_custom_call.1} parent=1 // pred_fallthru
      _
    // Predicated region
    $region10: #{tpu_custom_call.1} parent=1 // pred_check
      _
    $region11: #{tpu_custom_call.1} parent=1 // pred_check_branch
      %43 = sbr.rel (0) target = $region13
    $region12: #{tpu_custom_call.1} parent=1 // pred_region
      %44 = dma.done [#allocation3], 256
    $region13: #{tpu_custom_call.1} parent=1 // pred_fallthru
      _
    // Predicated region
    $region14: #{tpu_custom_call.1} parent=1 // pred_check
      _
    $region15: #{tpu_custom_call.1} parent=1 // pred_check_branch
      %46 = sbr.rel (0) target = $region17
    $region16: #{tpu_custom_call.1} parent=1 // pred_region
      %47 = dma.done [#allocation6], 256
    $region17: #{tpu_custom_call.1} parent=1 // pred_fallthru
      _
    %s48 = sadd.s32 0, 0
    %s49 = smul.u32 2, %s48
    %s50 = sadd.s32 0, 0
    %s51 = smul.u32 2, %s50
    %p52 = scmp.eq.s32.totalorder 0, 0
    // Predicated region
    $region18: #{tpu_custom_call.1} parent=1 // pred_check
      %p53 = pneg %p52
    $region19: #{tpu_custom_call.1} parent=1 // pred_check_branch
      %55 = sbr.rel (%p53) target = $region21
    $region20: #{tpu_custom_call.1} parent=1 // pred_region
      %56 = vst [vmem:[#allocation7] sm:$0xff] 0.0
    $region21: #{tpu_custom_call.1} parent=1 // pred_fallthru
      _
    %v57 = vld [vmem:[#allocation2] sm:$0xff]
    %v58 = vld [vmem:[#allocation2 + $0x8] sm:$0xff]
    %v59 = vld [vmem:[#allocation5] sm:$0xff]
    %v60 = vld [vmem:[#allocation5 + $0x8] sm:$0xff]
    %v61 = vsub.f32 %v57, %v59
    %v62 = vsub.f32 %v58, %v60
    %v63 = vmul.f32 %v61, %v61
    %v64 = vmul.f32 %v62, %v62
    %v65 = vld [vmem:[#allocation7] sm:$0xff]
    %v66 = vadd.f32 %v63, %v64
    %v67 = vadd.f32 %v65, %v66
    %68 = vst [vmem:[#allocation7] sm:$0xff] %v67
    // Predicated region
    $region22: #{tpu_custom_call.1} parent=1 // pred_check
      _
    $region23: #{tpu_custom_call.1} parent=1 // pred_check_branch
      %70 = sbr.rel (0) target = $region25
    $region24: #{tpu_custom_call.1} parent=1 // pred_region
      %s72 = ssub.s32 128, 128
      %73 = vsyncadd [#allocation4], %s72
      %s75 = sshll.u32 [#allocation7], 4
      %s76 = int_to_ptr.vmem [resolvable:$true] %s75
      %78 = dma.vmem_to_hbm [thread:$0]  %s76, 128, %s2, [#allocation4]
    $region25: #{tpu_custom_call.1} parent=1 // pred_fallthru
      _
    // Predicated region
    $region26: #{tpu_custom_call.1} parent=1 // pred_check
      _
    $region27: #{tpu_custom_call.1} parent=1 // pred_check_branch
      %80 = sbr.rel (0) target = $region29
    $region28: #{tpu_custom_call.1} parent=1 // pred_region
      %81 = dma.done [#allocation4], 128
    $region29: #{tpu_custom_call.1} parent=1 // pred_fallthru
      _
    %82 = vsyncpa [#allocation3], 1
    %83 = vsyncpa [#allocation6], 1
    %84 = vsyncpa [#allocation4], 1

</llo_original>
